<compile_context>
chip_gen: v6e
topology: v6e:2x2x1
jax: 0.10.0
libtpu: 0.0.40
codegen_flags: <defaults>
</compile_context>

<pallas_src>
import jax
import jax.numpy as jnp
from jax.experimental import pallas as pl
from jax.experimental.pallas import tpu as pltpu

EPS = 1e-5
TILE_BUDGET = 16 * 1024 * 1024       # target double-buffered per-step working set
MAX_IMAGES_PER_TILE = 32             # bounds the in-kernel static unroll
VMEM_LIMIT = 32 * 1024 * 1024        # safe scoped-VMEM ceiling on v5e/v6e/v7x


def _cdiv(a, b):
    return -(-a // b)


def _pick_images_per_tile(n, k, q, cout, itemsize):
    """Images per grid step: double-buffered patches + y tiles within budget."""
    per_image = (k * q + cout * q) * itemsize * 2
    bn = max(1, TILE_BUDGET // per_image)
    bn = min(bn, MAX_IMAGES_PER_TILE, n)
    if n >= 2:
        bn = min(bn, _cdiv(n, 2))    # >= 2 tiles so the parallel axis can split cores
    return int(bn)


def conv_stats_kernel(p_ref, w_ref, y_ref, stats_ref):
    """Per-image conv-as-matmul + per-channel sum / sum-of-squares accumulation."""
    i = pl.program_id(1)

    @pl.when(i == 0)
    def _init():
        stats_ref[...] = jnp.zeros_like(stats_ref)

    w = w_ref[...]                                    # (Cout, K), input dtype (bf16 ok)
    bn = p_ref.shape[0]
    cout = w_ref.shape[0]
    s = jnp.zeros((cout, 1), jnp.float32)
    ss = jnp.zeros((cout, 1), jnp.float32)
    for b in range(bn):                               # static unroll over tile's images
        yb = jnp.dot(w, p_ref[b], preferred_element_type=jnp.float32)  # (Cout, Q) MXU
        y_ref[b] = yb.astype(y_ref.dtype)
        s = s + jnp.sum(yb, axis=1, keepdims=True)    # XLU lane reduce (slack: HBM-bound)
        ss = ss + jnp.sum(yb * yb, axis=1, keepdims=True)
    # Accumulate directly into the resident per-core stats output (no scratch).
    stats_ref[0] = stats_ref[0] + jnp.concatenate([s, ss], axis=1)      # (Cout, 2)


def bn_apply_kernel(scale_ref, shift_ref, y_ref, out_ref):
    """Lean folded-BN epilogue: out = y*scale + shift (per channel), in place."""
    y = y_ref[...].astype(jnp.float32)
    out_ref[...] = (y * scale_ref[...] + shift_ref[...]).astype(out_ref.dtype)


@jax.jit
def downsample_d(x, conv_w, gamma, beta):
    """x: (N, Cin, H, W) NCHW; conv_w: (Cout, Cin, 2, 2); gamma/beta: (Cout,)."""
    N, Cin, H, W = x.shape
    Cout = conv_w.shape[0]
    assert H % 2 == 0 and W % 2 == 0
    Ho, Wo = H // 2, W // 2
    K, Q = Cin * 4, Ho * Wo
    isz = jnp.dtype(x.dtype).itemsize

    # Transposed im2col so the conv output lands NCHW-native.
    # TODO(synk): this is still one XLA-side pass over x (strided 2x2 deinterleave is
    # not a rectangular BlockSpec); allow_input_fusion hints XLA to fuse it into pass 1.
    patches = x.reshape(N, Cin, Ho, 2, Wo, 2)
    patches = patches.transpose(0, 1, 3, 5, 2, 4).reshape(N, K, Q)     # (N, K, Q)
    w2 = conv_w.reshape(Cout, K).astype(x.dtype)                       # (Cout, K)

    BN = _pick_images_per_tile(N, K, Q, Cout, isz)
    n_tiles = _cdiv(N, BN)
    NC = 2 if n_tiles >= 2 else 1        # leading "parallel" axis (megacore on v7x)
    T = _cdiv(n_tiles, NC)
    NP = NC * T * BN
    if NP != N:                          # zero images contribute 0 to sum & sumsq
        patches = jnp.pad(patches, ((0, NP - N), (0, 0), (0, 0)))

    # ---- Pass 1: conv + per-channel statistics (unpadded channels) -------------
    y, stats = pl.pallas_call(
        conv_stats_kernel,
        out_shape=(
            jax.ShapeDtypeStruct((NP, Cout, Q), x.dtype),      # un-normalized conv, NCHW
            jax.ShapeDtypeStruct((NC, Cout, 2), jnp.float32),  # per-core [sum, sumsq]
        ),
        grid=(NC, T),
        in_specs=[
            pl.BlockSpec((BN, K, Q), lambda c, i: (c * T + i, 0, 0)),   # streamed patches
            pl.BlockSpec((Cout, K), lambda c, i: (0, 0)),               # resident weights
        ],
        out_specs=(
            pl.BlockSpec((BN, Cout, Q), lambda c, i: (c * T + i, 0, 0)),
            pl.BlockSpec((1, Cout, 2), lambda c, i: (c, 0, 0)),         # resident per core
        ),
        compiler_params=pltpu.CompilerParams(
            dimension_semantics=("parallel", "arbitrary"),   # stats carried across inner
            vmem_limit_bytes=VMEM_LIMIT,
            allow_input_fusion=[True, False],                # fuse im2col into the call
        ),
        cost_estimate=pl.CostEstimate(
            flops=2 * NP * Q * K * Cout,
            transcendentals=0,
            bytes_accessed=(NP * K * Q + Cout * K + NP * Cout * Q) * isz
                           + NC * Cout * 2 * 4,
        ),
    )(patches, w2)

    # ---- Fold BN constants per channel (tiny (Cout, 1) math) -------------------
    tot = stats.sum(axis=0)                              # combine per-core partials
    cnt = float(N * Q)                                   # true element count per channel
    mean = tot[:, 0:1] / cnt                             # (Cout, 1)
    var = tot[:, 1:2] / cnt - mean * mean                # biased variance
    inv_std = jax.lax.rsqrt(var + EPS)
    scale = gamma.astype(jnp.float32).reshape(Cout, 1) * inv_std
    shift = beta.astype(jnp.float32).reshape(Cout, 1) - mean * scale

    # ---- Pass 2: apply scale/shift tile-by-tile, in place ----------------------
    NT = NP // BN
    out = pl.pallas_call(
        bn_apply_kernel,
        out_shape=jax.ShapeDtypeStruct((NP, Cout, Q), x.dtype),
        grid=(NT,),
        in_specs=[
            pl.BlockSpec((Cout, 1), lambda i: (0, 0)),           # resident scale
            pl.BlockSpec((Cout, 1), lambda i: (0, 0)),           # resident shift
            pl.BlockSpec((BN, Cout, Q), lambda i: (i, 0, 0)),    # streamed y
        ],
        out_specs=pl.BlockSpec((BN, Cout, Q), lambda i: (i, 0, 0)),
        input_output_aliases={2: 0},                             # normalize y in place
        compiler_params=pltpu.CompilerParams(
            dimension_semantics=("parallel",),
            vmem_limit_bytes=VMEM_LIMIT,
        ),
        cost_estimate=pl.CostEstimate(
            flops=2 * NP * Cout * Q,
            transcendentals=0,
            bytes_accessed=2 * NP * Cout * Q * isz + 4 * Cout * 4,
        ),
    )(scale, shift, y)

    if NP != N:
        out = out[:N]
    return out.reshape(N, Cout, Ho, Wo)      # free: splits the minor dim only


def downsample_d_reference(x, conv_w, gamma, beta):
    y = jax.lax.conv_general_dilated(
        x, conv_w, window_strides=(2, 2), padding="VALID",
        dimension_numbers=("NCHW", "OIHW", "NCHW"))
    mean = y.mean(axis=(0, 2, 3), keepdims=True)
    var = ((y - mean) ** 2).mean(axis=(0, 2, 3), keepdims=True)
    return (y - mean) * jax.lax.rsqrt(var + EPS) * gamma.reshape(1, -1, 1, 1) \
           + beta.reshape(1, -1, 1, 1)


if __name__ == "__main__":
    # Small shapes consistent with the module: nIn=4, nOut=8, stride=2.
    N, Cin, H, W = 2, 4, 16, 16
    Cout = 8

    key = jax.random.PRNGKey(0)
    k_x, k_w, k_g, k_b = jax.random.split(key, 4)

    x = jax.random.normal(k_x, (N, Cin, H, W), dtype=jnp.float32)
    conv_w = jax.random.normal(k_w, (Cout, Cin, 2, 2), dtype=jnp.float32) * 0.1
    gamma = 1.0 + 0.1 * jax.random.normal(k_g, (Cout,), dtype=jnp.float32)
    beta = 0.1 * jax.random.normal(k_b, (Cout,), dtype=jnp.float32)

    out = downsample_d(x, conv_w, gamma, beta)
    out = jax.block_until_ready(out)

    ref = downsample_d_reference(x, conv_w, gamma, beta)
    assert out.shape == (N, Cout, H // 2, W // 2)
    assert jnp.allclose(out, ref, atol=1e-4, rtol=1e-4), "mismatch vs reference"

    print("KERNEL_OK")
</pallas_src>

<mosaic_0001>
module attributes {stable_mosaic.version = 11 : i64} {
  func.func @conv_stats_kernel(%arg0: i32, %arg1: i32, %arg2: memref<1x16x64xf32, #tpu.memory_space<vmem>>, %arg3: memref<8x16xf32, #tpu.memory_space<vmem>>, %arg4: memref<1x8x64xf32, #tpu.memory_space<vmem>>, %arg5: memref<1x8x2xf32, #tpu.memory_space<vmem>>) attributes {dimension_semantics = [#tpu.dimension_semantics<parallel>, #tpu.dimension_semantics<arbitrary>], iteration_bounds = array<i64: 2, 1>, scalar_prefetch = 0 : i64, scratch_operands = 0 : i64, tpu.core_type = #tpu.core_type<tc>, window_params = [{transform_indices = @transform_0, window_bounds = array<i64: 1, 16, 64>}, {pipeline_mode = #tpu.pipeline_mode<synchronous>, transform_indices = @transform_1, window_bounds = array<i64: 8, 16>}, {transform_indices = @transform_2, window_bounds = array<i64: 1, 8, 64>}, {transform_indices = @transform_3, window_bounds = array<i64: 1, 8, 2>}]} {
    %c0_i32 = arith.constant 0 : i32
    %0 = arith.cmpi eq, %arg1, %c0_i32 : i32
    %1 = arith.extui %0 : i1 to i32
    %c0_i32_0 = arith.constant 0 : i32
    %2 = arith.cmpi ne, %1, %c0_i32_0 : i32
    scf.if %2 {
      %cst_18 = arith.constant 0.000000e+00 : f32
      %26 = vector.broadcast %cst_18 : f32 to vector<1x8x2xf32>
      %c0_19 = arith.constant 0 : index
      %c0_20 = arith.constant 0 : index
      %c0_21 = arith.constant 0 : index
      %27 = vector.load %arg5[%c0_19, %c0_20, %c0_21] : memref<1x8x2xf32, #tpu.memory_space<vmem>>, vector<1x8x2xf32>
      tpu.vector_store %arg5[%c0_19, %c0_20, %c0_21], %26 {strides = array<i32>} : memref<1x8x2xf32, #tpu.memory_space<vmem>>, vector<1x8x2xf32>,
    } else {
    }
    %c0 = arith.constant 0 : index
    %c0_1 = arith.constant 0 : index
    %3 = vector.load %arg3[%c0, %c0_1] : memref<8x16xf32, #tpu.memory_space<vmem>>, vector<8x16xf32>
    %cst = arith.constant 0.000000e+00 : f32
    %4 = vector.broadcast %cst : f32 to vector<8x1xf32>
    %cst_2 = arith.constant 0.000000e+00 : f32
    %5 = vector.broadcast %cst_2 : f32 to vector<8x1xf32>
    %c0_3 = arith.constant 0 : index
    %c0_4 = arith.constant 0 : index
    %c0_5 = arith.constant 0 : index
    %6 = vector.load %arg2[%c0_3, %c0_4, %c0_5] : memref<1x16x64xf32, #tpu.memory_space<vmem>>, vector<1x16x64xf32>
    %7 = vector.shape_cast %6 : vector<1x16x64xf32> to vector<16x64xf32>
    %cst_6 = arith.constant dense<0.000000e+00> : vector<8x64xf32>
    %8 = tpu.matmul %3, %7, %cst_6 {dimension_numbers = #tpu.dot_dimension_numbers<[1], [0], [0], [1], [0, 0, 1, 1], [], []>} : vector<8x16xf32>, vector<16x64xf32>, vector<8x64xf32> -> vector<8x64xf32>
    %c0_7 = arith.constant 0 : index
    %c0_8 = arith.constant 0 : index
    %c0_9 = arith.constant 0 : index
    %9 = vector.load %arg4[%c0_7, %c0_8, %c0_9] : memref<1x8x64xf32, #tpu.memory_space<vmem>>, vector<1x8x64xf32>
    %10 = vector.shape_cast %9 : vector<1x8x64xf32> to vector<8x64xf32>
    %11 = vector.shape_cast %8 : vector<8x64xf32> to vector<1x8x64xf32>
    tpu.vector_store %arg4[%c0_7, %c0_8, %c0_9], %11 {strides = array<i32>} : memref<1x8x64xf32, #tpu.memory_space<vmem>>, vector<1x8x64xf32>,
    %cst_10 = arith.constant dense<0.000000e+00> : vector<8xf32>
    %12 = vector.multi_reduction <add>, %8, %cst_10 [1] : vector<8x64xf32> to vector<8xf32>
    %13 = vector.shape_cast %12 : vector<8xf32> to vector<8x1xf32>
    %14 = arith.addf %4, %13 : vector<8x1xf32>
    %15 = arith.mulf %8, %8 : vector<8x64xf32>
    %cst_11 = arith.constant dense<0.000000e+00> : vector<8xf32>
    %16 = vector.multi_reduction <add>, %15, %cst_11 [1] : vector<8x64xf32> to vector<8xf32>
    %17 = vector.shape_cast %16 : vector<8xf32> to vector<8x1xf32>
    %18 = arith.addf %5, %17 : vector<8x1xf32>
    %c0_12 = arith.constant 0 : index
    %c0_13 = arith.constant 0 : index
    %c0_14 = arith.constant 0 : index
    %19 = vector.load %arg5[%c0_12, %c0_13, %c0_14] : memref<1x8x2xf32, #tpu.memory_space<vmem>>, vector<1x8x2xf32>
    %20 = vector.shape_cast %19 : vector<1x8x2xf32> to vector<8x2xf32>
    %21 = tpu.concatenate %14, %18 in 1 : vector<8x1xf32>, vector<8x1xf32> -> vector<8x2xf32>
    %22 = arith.addf %20, %21 : vector<8x2xf32>
    %c0_15 = arith.constant 0 : index
    %c0_16 = arith.constant 0 : index
    %c0_17 = arith.constant 0 : index
    %23 = vector.load %arg5[%c0_15, %c0_16, %c0_17] : memref<1x8x2xf32, #tpu.memory_space<vmem>>, vector<1x8x2xf32>
    %24 = vector.shape_cast %23 : vector<1x8x2xf32> to vector<8x2xf32>
    %25 = vector.shape_cast %22 : vector<8x2xf32> to vector<1x8x2xf32>
    tpu.vector_store %arg5[%c0_15, %c0_16, %c0_17], %25 {strides = array<i32>} : memref<1x8x2xf32, #tpu.memory_space<vmem>>, vector<1x8x2xf32>,
    return
  }
  func.func @transform_0(%arg0: i32, %arg1: i32) -> (i32, i32, i32) {
    %c1_i32 = arith.constant 1 : i32
    %0 = arith.muli %arg0, %c1_i32 : i32
    %1 = arith.addi %0, %arg1 : i32
    %c0_i32 = arith.constant 0 : i32
    %c0_i32_0 = arith.constant 0 : i32
    %c0_i32_1 = arith.constant 0 : i32
    return %1, %c0_i32, %c0_i32_0 : i32, i32, i32
  }
  func.func @transform_1(%arg0: i32, %arg1: i32) -> (i32, i32) {
    %c0_i32 = arith.constant 0 : i32
    %c0_i32_0 = arith.constant 0 : i32
    %c0_i32_1 = arith.constant 0 : i32
    return %c0_i32, %c0_i32_0 : i32, i32
  }
  func.func @transform_2(%arg0: i32, %arg1: i32) -> (i32, i32, i32) {
    %c1_i32 = arith.constant 1 : i32
    %0 = arith.muli %arg0, %c1_i32 : i32
    %1 = arith.addi %0, %arg1 : i32
    %c0_i32 = arith.constant 0 : i32
    %c0_i32_0 = arith.constant 0 : i32
    %c0_i32_1 = arith.constant 0 : i32
    return %1, %c0_i32, %c0_i32_0 : i32, i32, i32
  }
  func.func @transform_3(%arg0: i32, %arg1: i32) -> (i32, i32, i32) {
    %c0_i32 = arith.constant 0 : i32
    %c0_i32_0 = arith.constant 0 : i32
    %c0_i32_1 = arith.constant 0 : i32
    return %arg0, %c0_i32, %c0_i32_0 : i32, i32, i32
  }
}

module attributes {stable_mosaic.version = 11 : i64} {
  func.func @bn_apply_kernel(%arg0: i32, %arg1: memref<8x1xf32, #tpu.memory_space<vmem>>, %arg2: memref<8x1xf32, #tpu.memory_space<vmem>>, %arg3: memref<1x8x64xf32, #tpu.memory_space<vmem>>, %arg4: memref<1x8x64xf32, #tpu.memory_space<vmem>>) attributes {dimension_semantics = [#tpu.dimension_semantics<parallel>], iteration_bounds = array<i64: 2>, scalar_prefetch = 0 : i64, scratch_operands = 0 : i64, tpu.core_type = #tpu.core_type<tc>, window_params = [{pipeline_mode = #tpu.pipeline_mode<synchronous>, transform_indices = @transform_0, window_bounds = array<i64: 8, 1>}, {pipeline_mode = #tpu.pipeline_mode<synchronous>, transform_indices = @transform_1, window_bounds = array<i64: 8, 1>}, {transform_indices = @transform_2, window_bounds = array<i64: 1, 8, 64>}, {transform_indices = @transform_3, window_bounds = array<i64: 1, 8, 64>}]} {
    %c0 = arith.constant 0 : index
    %c0_0 = arith.constant 0 : index
    %c0_1 = arith.constant 0 : index
    %0 = vector.load %arg3[%c0, %c0_0, %c0_1] : memref<1x8x64xf32, #tpu.memory_space<vmem>>, vector<1x8x64xf32>
    %c0_2 = arith.constant 0 : index
    %c0_3 = arith.constant 0 : index
    %1 = vector.load %arg1[%c0_2, %c0_3] : memref<8x1xf32, #tpu.memory_space<vmem>>, vector<8x1xf32>
    %2 = vector.shape_cast %1 : vector<8x1xf32> to vector<1x8x1xf32>
    %3 = vector.broadcast %2 : vector<1x8x1xf32> to vector<1x8x64xf32>
    %4 = arith.mulf %0, %3 : vector<1x8x64xf32>
    %c0_4 = arith.constant 0 : index
    %c0_5 = arith.constant 0 : index
    %5 = vector.load %arg2[%c0_4, %c0_5] : memref<8x1xf32, #tpu.memory_space<vmem>>, vector<8x1xf32>
    %6 = vector.shape_cast %5 : vector<8x1xf32> to vector<1x8x1xf32>
    %7 = vector.broadcast %6 : vector<1x8x1xf32> to vector<1x8x64xf32>
    %8 = arith.addf %4, %7 : vector<1x8x64xf32>
    %c0_6 = arith.constant 0 : index
    %c0_7 = arith.constant 0 : index
    %c0_8 = arith.constant 0 : index
    %9 = vector.load %arg4[%c0_6, %c0_7, %c0_8] : memref<1x8x64xf32, #tpu.memory_space<vmem>>, vector<1x8x64xf32>
    tpu.vector_store %arg4[%c0_6, %c0_7, %c0_8], %8 {strides = array<i32>} : memref<1x8x64xf32, #tpu.memory_space<vmem>>, vector<1x8x64xf32>,
    return
  }
  func.func @transform_0(%arg0: i32) -> (i32, i32) {
    %c0_i32 = arith.constant 0 : i32
    %c0_i32_0 = arith.constant 0 : i32
    %c0_i32_1 = arith.constant 0 : i32
    return %c0_i32, %c0_i32_0 : i32, i32
  }
  func.func @transform_1(%arg0: i32) -> (i32, i32) {
    %c0_i32 = arith.constant 0 : i32
    %c0_i32_0 = arith.constant 0 : i32
    %c0_i32_1 = arith.constant 0 : i32
    return %c0_i32, %c0_i32_0 : i32, i32
  }
  func.func @transform_2(%arg0: i32) -> (i32, i32, i32) {
    %c0_i32 = arith.constant 0 : i32
    %c0_i32_0 = arith.constant 0 : i32
    %c0_i32_1 = arith.constant 0 : i32
    return %arg0, %c0_i32, %c0_i32_0 : i32, i32, i32
  }
  func.func @transform_3(%arg0: i32) -> (i32, i32, i32) {
    %c0_i32 = arith.constant 0 : i32
    %c0_i32_0 = arith.constant 0 : i32
    %c0_i32_1 = arith.constant 0 : i32
    return %arg0, %c0_i32, %c0_i32_0 : i32, i32, i32
  }
}

</mosaic_0001>

<llo_original>
// kernel: downsample_d.2
$region0: #{downsample_d.2}
  #allocation0 [shape = 'u32[]', space=smem, size = 0x4, offset = 0x4, fixed_abs, tag = 'smem constant byte address 0x4 - core index']
  #allocation1 [shape = 'u32[144,128]{1,0:T(1,128)}', space=vmem, size = 0x12000, scoped, tag = 'internal scratch']
  %s0 = inlined_call_operand.vmem [shape: f32[2,16,64], index: 0, kind: input, shape index: {}]
  %s1 = inlined_call_operand.vmem [shape: f32[8,16], index: 1, kind: input, shape index: {}]
  %s2 = inlined_call_operand.vmem [shape: f32[2,8,64], index: 2, kind: output, shape index: {0}]
  %s3 = inlined_call_operand.vmem [shape: f32[2,8,2], index: 3, kind: output, shape index: {1}]
  %4 = xla_tuple %s2, %s3
  %s5 = sld [smem:[#allocation0]]
  $region53: #{downsample_d.2} parent=0
    _
  %s7 = ssub.s32 1, %s5
  %s8 = scalar_select 0, %s7, %s5
  loop: start=0, step=1, limit=4
  $region2: #{downsample_d.2} parent=0 // loop_pre_header
    _
  $region3: #{downsample_d.2} parent=0 // loop_header
    %s10 = sphi 0, %s14
    %p11 = scmp.ge.s32.totalorder %s10, 4
    %s17 = sphi 0, %s29
    %s18 = sphi 0, %s25
    %s19 = sphi 0, %s17
    %s20 = sphi 0, %s18
    %s21 = sphi 0, %s19
    %s22 = sphi 0, %s20
    %s34 = sphi 0, %s36
    %s37 = sphi 0, %s34
    %s38 = sphi 0, %s37
    %s54 = sphi 0, %s38
    %s58 = sphi 0, %s58
    %s60 = sphi 0, %s58
    %s61 = sphi 0, %s60
    %s75 = sphi 0, %s61
    %s83 = sphi 0, %s85
    %s86 = sphi 0, %s83
    %s87 = sphi 0, %s86
    %s103 = sphi 0, %s87
    %s109 = sphi 0, %s111
    %s112 = sphi 0, %s109
    %s113 = sphi 0, %s112
    %s129 = sphi 0, %s113
  $region4: #{downsample_d.2} parent=0 // loop_header_branch
    %13 = sbr.rel (%p11) target = $region8
  $region5: #{downsample_d.2} parent=0 // loop_body
    %s15 = ssub.s32 %s10, 1
    %s16 = ssub.s32 %s10, 2
    %s23 = sadd.s32 1, %s18
    %p24 = scmp.ge.s32.totalorder %s23, 1
    %s25 = scalar_select %p24, 0, %s23
    %s26 = sadd.s32 1, %s17
    %s27 = scalar_select %p24, %s26, %s17
    %p28 = scmp.ge.s32.totalorder %s27, 2
    %s29 = scalar_select %p28, 0, %s27
    %s30 = sadd.s32 %s17, %s18
    %s31 = sadd.s32 %s29, %s25
    %s32 = ssub.s32 %s30, %s31
    %p33 = scmp.eq.s32.totalorder %s32, 0
    %s35 = sadd.s32 %s34, 1
    %s36 = scalar_select %p33, %s34, %s35
    %p39 = pneg %p33
    %p40 = scmp.eq.s32.totalorder %s10, 1
    %p41 = por %p39, %p40
    %p42 = scmp.ne.s32.totalorder %s34, %s37
    %p43 = scmp.eq.s32.totalorder %s10, 0
    %p44 = por %p42, %p43
    %p45 = scmp.ne.s32.totalorder %s34, %s37
    %p46 = scmp.eq.s32.totalorder %s15, 1
    %p47 = por %p45, %p46
    %p48 = scmp.ne.s32.totalorder %s37, %s38
    %p49 = scmp.eq.s32.totalorder %s15, 0
    %p50 = por %p48, %p49
    %p51 = scmp.ne.s32.totalorder %s37, %s38
    %p52 = scmp.eq.s32.totalorder %s16, 1
    %p53 = por %p51, %p52
    %p55 = scmp.ne.s32.totalorder %s38, %s54
    %p56 = scmp.eq.s32.totalorder %s16, 0
    %p57 = por %p55, %p56
    %s59 = sadd.s32 %s58, 1
    %p62 = scmp.eq.s32.totalorder %s10, 1
    %p63 = scmp.ne.s32.totalorder %s58, %s60
    %p64 = scmp.eq.s32.totalorder %s10, 0
    %p65 = por %p63, %p64
    %p66 = scmp.ne.s32.totalorder %s58, %s60
    %p67 = scmp.eq.s32.totalorder %s15, 1
    %p68 = por %p66, %p67
    %p69 = scmp.ne.s32.totalorder %s60, %s61
    %p70 = scmp.eq.s32.totalorder %s15, 0
    %p71 = por %p69, %p70
    %p72 = scmp.ne.s32.totalorder %s60, %s61
    %p73 = scmp.eq.s32.totalorder %s16, 1
    %p74 = por %p72, %p73
    %p76 = scmp.ne.s32.totalorder %s61, %s75
    %p77 = scmp.eq.s32.totalorder %s16, 0
    %p78 = por %p76, %p77
    %s79 = sadd.s32 %s17, %s18
    %s80 = sadd.s32 %s29, %s25
    %s81 = ssub.s32 %s79, %s80
    %p82 = scmp.eq.s32.totalorder %s81, 0
    %s84 = sadd.s32 %s83, 1
    %s85 = scalar_select %p82, %s83, %s84
    %p88 = pneg %p82
    %p89 = scmp.eq.s32.totalorder %s10, 1
    %p90 = por %p88, %p89
    %p91 = scmp.ne.s32.totalorder %s83, %s86
    %p92 = scmp.eq.s32.totalorder %s10, 0
    %p93 = por %p91, %p92
    %p94 = scmp.ne.s32.totalorder %s83, %s86
    %p95 = scmp.eq.s32.totalorder %s15, 1
    %p96 = por %p94, %p95
    %p97 = scmp.ne.s32.totalorder %s86, %s87
    %p98 = scmp.eq.s32.totalorder %s15, 0
    %p99 = por %p97, %p98
    %p100 = scmp.ne.s32.totalorder %s86, %s87
    %p101 = scmp.eq.s32.totalorder %s16, 1
    %p102 = por %p100, %p101
    %p104 = scmp.ne.s32.totalorder %s87, %s103
    %p105 = scmp.eq.s32.totalorder %s16, 0
    %p106 = por %p104, %p105
    %s107 = ssub.s32 %s17, %s29
    %p108 = scmp.eq.s32.totalorder %s107, 0
    %s110 = sadd.s32 %s109, 1
    %s111 = scalar_select %p108, %s109, %s110
    %p114 = pneg %p108
    %p115 = scmp.eq.s32.totalorder %s10, 1
    %p116 = por %p114, %p115
    %p117 = scmp.ne.s32.totalorder %s109, %s112
    %p118 = scmp.eq.s32.totalorder %s10, 0
    %p119 = por %p117, %p118
    %p120 = scmp.ne.s32.totalorder %s109, %s112
    %p121 = scmp.eq.s32.totalorder %s15, 1
    %p122 = por %p120, %p121
    %p123 = scmp.ne.s32.totalorder %s112, %s113
    %p124 = scmp.eq.s32.totalorder %s15, 0
    %p125 = por %p123, %p124
    %p126 = scmp.ne.s32.totalorder %s112, %s113
    %p127 = scmp.eq.s32.totalorder %s16, 1
    %p128 = por %p126, %p127
    %p130 = scmp.ne.s32.totalorder %s113, %s129
    %p131 = scmp.eq.s32.totalorder %s16, 0
    %p132 = por %p130, %p131
    %p133 = scmp.le.s32.totalorder 1, %s10
    %p134 = scmp.lt.s32.totalorder %s10, 3
    %p135 = pnand %p133, %p134
    %p136 = pneg %p135
    // Predicated region
    $region9: #{downsample_d.2} parent=5 // pred_check
      _
    $region10: #{downsample_d.2} parent=5 // pred_check_branch
      %138 = sbr.rel (%p135) target = $region12
    $region11: #{downsample_d.2} parent=5 // pred_region
      %s139 = ssub.s32 %s10, 1
      // Predicated region
      $region13: #{downsample_d.2} parent=11 // pred_check
        %p140 = pneg %p71
      $region14: #{downsample_d.2} parent=11 // pred_check_branch
        %142 = sbr.rel (%p140) target = $region16
      $region15: #{downsample_d.2} parent=11 // pred_region
        _
      $region16: #{downsample_d.2} parent=11 // pred_fallthru
        _
    $region12: #{downsample_d.2} parent=5 // pred_fallthru
      _
    %p143 = scmp.lt.s32.totalorder %s10, 2
    // Predicated region
    $region17: #{downsample_d.2} parent=5 // pred_check
      %p144 = pneg %p143
    $region18: #{downsample_d.2} parent=5 // pred_check_branch
      %146 = sbr.rel (%p144) target = $region20
    $region19: #{downsample_d.2} parent=5 // pred_region
      // Predicated region
      $region21: #{downsample_d.2} parent=19 // pred_check
        %p147 = pneg %p44
      $region22: #{downsample_d.2} parent=19 // pred_check_branch
        %149 = sbr.rel (%p147) target = $region24
      $region23: #{downsample_d.2} parent=19 // pred_region
        %s150 = sadd.s32 %s17, %s18
        %p151 = scmp.lt.s32.totalorder %s150, 1
        %s152 = scalar_select %p151, %s150, 1
        %s153 = smul.addr %s152, 2
        %s154 = smul.addr %s153, 8
        %s155 = scalar_lea.vmem %s0, %s154
        %s156 = sadd.s32 %s17, %s18
      $region24: #{downsample_d.2} parent=19 // pred_fallthru
        _
    $region20: #{downsample_d.2} parent=5 // pred_fallthru
      _
    %p157 = scmp.le.s32.totalorder 1, %s10
    %p158 = scmp.lt.s32.totalorder %s10, 3
    %p159 = pnand %p157, %p158
    %p160 = pneg %p159
    // Predicated region
    $region25: #{downsample_d.2} parent=5 // pred_check
      _
    $region26: #{downsample_d.2} parent=5 // pred_check_branch
      %162 = sbr.rel (%p159) target = $region28
    $region27: #{downsample_d.2} parent=5 // pred_region
      %s163 = ssub.s32 %s10, 1
      %s164 = sadd.s32 %s19, %s20
      %p165 = scmp.lt.s32.totalorder %s164, 1
      %s166 = scalar_select %p165, %s164, 1
      %s167 = smul.addr %s166, 2
      %s168 = smul.addr %s167, 8
      %s169 = scalar_lea.vmem %s0, %s168
      %p170 = pneg %p50
      %p171 = pneg %p47
      %p172 = pneg %p71
      %p173 = pneg %p68
      %p174 = pneg %p99
      %p175 = pneg %p96
      %s176 = sadd.s32 %s19, %s20
      %p177 = scmp.lt.s32.totalorder %s176, 1
      %s178 = scalar_select %p177, %s176, 1
      %s179 = smul.addr %s178, 8
      %s180 = scalar_lea.vmem %s2, %s179
      %p181 = pneg %p125
      %p182 = pneg %p122
      %p183 = scmp.lt.s32.totalorder %s19, 1
      %s184 = scalar_select %p183, %s19, 1
      %s185 = smul.addr %s184, 8
      %s186 = scalar_lea.vmem %s3, %s185
      %s187 = sadd.s32 %s19, %s20
      %p188 = scmp.lt.s32.totalorder %s187, 1
      %s189 = scalar_select %p188, %s187, 1
      %s190 = smul.addr %s189, 2
      %s191 = smul.addr %s190, 8
      %s192 = scalar_lea.vmem %s0, %s191
      %s193 = sadd.s32 %s19, %s20
      %s194 = sadd.s32 %s19, %s20
      %p195 = scmp.lt.s32.totalorder %s194, 1
      %s196 = scalar_select %p195, %s194, 1
      %s197 = smul.addr %s196, 8
      %s198 = scalar_lea.vmem %s2, %s197
      %s199 = sadd.s32 %s19, %s20
      %p200 = scmp.lt.s32.totalorder %s19, 1
      %s201 = scalar_select %p200, %s19, 1
      %s202 = smul.addr %s201, 8
      %s203 = scalar_lea.vmem %s3, %s202
      %p204 = scmp.eq.s32.totalorder %s20, 0
      // Predicated region
      $region29: #{downsample_d.2} parent=27 // pred_check
        %p205 = pneg %p204
      $region30: #{downsample_d.2} parent=27 // pred_check_branch
        %207 = sbr.rel (%p205) target = $region32
      $region31: #{downsample_d.2} parent=27 // pred_region
        %vm208 = vcmask 15360
        %209 = vst.msk [vmem:[%s203] sm:$0xff] %vm208, 0.0
      $region32: #{downsample_d.2} parent=27 // pred_fallthru
        _
      %v210 = vld [vmem:[%s1] sm:$0xff]
      %v211 = vld [vmem:[%s192] sm:$0xff]
      %v212 = vld [vmem:[%s192 + $0x8] sm:$0xff]
      %vm213 = vcmask 130048
      %v215 = vsel %vm213, %v210, 0
      %217 = vmatprep.subr.mxu0 0.0
      %218 = vmatpush1.msra.mxu0 0.0
      %219 = vmatprep.subr.mxu0 0.0
      %220 = vmatpush1.msra.mxu0 0.0
      %221 = vmatprep.subr.mxu0 0.0
      %222 = vmatpush1.msra.mxu0 0.0
      %223 = vmatprep.subr.mxu0 0.0
      %224 = vmatpush1.msra.mxu0 0.0
      %225 = vmatprep.subr.mxu0 0.0
      %226 = vmatpush1.msra.mxu0 0.0
      %227 = vmatprep.subr.mxu0 0.0
      %228 = vmatpush1.msra.mxu0 0.0
      %229 = vmatprep.subr.mxu0 0.0
      %230 = vmatpush1.msra.mxu0 0.0
      %231 = vmatprep.subr.mxu0 0.0
      %232 = vmatpush1.msra.mxu0 0.0
      %233 = vmatprep.subr.mxu0 0.0
      %234 = vmatpush1.msra.mxu0 0.0
      %235 = vmatprep.subr.mxu0 0.0
      %236 = vmatpush1.msra.mxu0 0.0
      %237 = vmatprep.subr.mxu0 0.0
      %238 = vmatpush1.msra.mxu0 0.0
      %239 = vmatprep.subr.mxu0 0.0
      %240 = vmatpush1.msra.mxu0 0.0
      %241 = vmatprep.subr.mxu0 0.0
      %242 = vmatpush1.msra.mxu0 0.0
      %243 = vmatprep.subr.mxu0 0.0
      %244 = vmatpush1.msra.mxu0 0.0
      %245 = vmatprep.subr.mxu0 0.0
      %246 = vmatpush1.msra.mxu0 %v212
      %247 = vmatprep.subr.mxu0 0.0
      %248 = vmatpush1.msra.mxu0 %v211
      %249 = vmatprep.subr.mxu0 0.0
      %250 = vmatpush2.msra.mxu0 0.0
      %251 = vmatprep.subr.mxu0 0.0
      %252 = vmatpush2.msra.mxu0 0.0
      %253 = vmatprep.subr.mxu0 0.0
      %254 = vmatpush2.msra.mxu0 0.0
      %255 = vmatprep.subr.mxu0 0.0
      %256 = vmatpush2.msra.mxu0 0.0
      %257 = vmatprep.subr.mxu0 0.0
      %258 = vmatpush2.msra.mxu0 0.0
      %259 = vmatprep.subr.mxu0 0.0
      %260 = vmatpush2.msra.mxu0 0.0
      %261 = vmatprep.subr.mxu0 0.0
      %262 = vmatpush2.msra.mxu0 0.0
      %263 = vmatprep.subr.mxu0 0.0
      %264 = vmatpush2.msra.mxu0 0.0
      %265 = vmatprep.subr.mxu0 0.0
      %266 = vmatpush2.msra.mxu0 0.0
      %267 = vmatprep.subr.mxu0 0.0
      %268 = vmatpush2.msra.mxu0 0.0
      %269 = vmatprep.subr.mxu0 0.0
      %270 = vmatpush2.msra.mxu0 0.0
      %271 = vmatprep.subr.mxu0 0.0
      %272 = vmatpush2.msra.mxu0 0.0
      %273 = vmatprep.subr.mxu0 0.0
      %274 = vmatpush2.msra.mxu0 0.0
      %275 = vmatprep.subr.mxu0 0.0
      %276 = vmatpush2.msra.mxu0 0.0
      %277 = vmatprep.subr.mxu0 0.0
      %278 = vmatpush2.msra.mxu0 0.0
      %279 = vmatprep.subr.mxu0 0.0
      %280 = vmatpush2.msra.mxu0 0.0
      %281 = vmatprep.mubr.f32.mxu0 0.0
      %282 = vmatmul.mubr.f32.gmra.mxu0 %v215
      %v283 = vpop.f32.mrf.mxu0
      %v284 = vadd.f32 0.0, %v283
      %v285 = vpop.f32.mrf.mxu0
      %286 = vdwg.mxu0
      %vm287 = vcmask 523264
      %288 = vst.msk [vmem:[%s198] sm:$0xff] %vm287, %v284
      %v289 = vsel %vm287, %v284, 0.0
      %290 = vadd.xlane.f32.xlu0 %v289
      %v291 = vpop.xlane.xlu0 %290
      %v292 = vadd.f32 %v291, 0.0
      %v293 = vmul.f32 %v284, %v284
      %v294 = vsel %vm287, %v293, 0.0
      %295 = vadd.xlane.f32.xlu0 %v294
      %v296 = vpop.xlane.xlu0 %295
      %v297 = vadd.f32 %v296, 0.0
      %v298 = vld [vmem:[%s203] sm:$0xff]
      %vm299 = vcmask 7168
      %v300 = vsel %vm299, %v292, %v297
      %v301 = vadd.f32 %v298, %v300
      %vm302 = vcmask 15360
      %303 = vst.msk [vmem:[%s203] sm:$0xff] %vm302, %v301
      %s304 = sadd.s32 %s19, %s20
      %p305 = scmp.lt.s32.totalorder %s304, 1
      %s306 = scalar_select %p305, %s304, 1
      %s307 = smul.addr %s306, 8
      %s308 = scalar_lea.vmem %s2, %s307
      %p309 = scmp.lt.s32.totalorder %s19, 1
      %s310 = scalar_select %p309, %s19, 1
      %s311 = smul.addr %s310, 8
      %s312 = scalar_lea.vmem %s3, %s311
      // Predicated region
      $region33: #{downsample_d.2} parent=27 // pred_check
        %p313 = pneg %p96
      $region34: #{downsample_d.2} parent=27 // pred_check_branch
        %315 = sbr.rel (%p313) target = $region36
      $region35: #{downsample_d.2} parent=27 // pred_region
        %s316 = sadd.s32 %s19, %s20
      $region36: #{downsample_d.2} parent=27 // pred_fallthru
        _
      // Predicated region
      $region37: #{downsample_d.2} parent=27 // pred_check
        %p317 = pneg %p122
      $region38: #{downsample_d.2} parent=27 // pred_check_branch
        %319 = sbr.rel (%p317) target = $region40
      $region39: #{downsample_d.2} parent=27 // pred_region
        _
      $region40: #{downsample_d.2} parent=27 // pred_fallthru
        _
    $region28: #{downsample_d.2} parent=5 // pred_fallthru
      _
    %p320 = scmp.le.s32.totalorder 2, %s10
    // Predicated region
    $region41: #{downsample_d.2} parent=5 // pred_check
      %p321 = pneg %p320
    $region42: #{downsample_d.2} parent=5 // pred_check_branch
      %323 = sbr.rel (%p321) target = $region44
    $region43: #{downsample_d.2} parent=5 // pred_region
      %s324 = ssub.s32 %s10, 2
      // Predicated region
      $region45: #{downsample_d.2} parent=43 // pred_check
        %p325 = pneg %p102
      $region46: #{downsample_d.2} parent=43 // pred_check_branch
        %327 = sbr.rel (%p325) target = $region48
      $region47: #{downsample_d.2} parent=43 // pred_region
        %s328 = sadd.s32 %s21, %s22
        %p329 = scmp.lt.s32.totalorder %s328, 1
        %s330 = scalar_select %p329, %s328, 1
        %s331 = smul.addr %s330, 8
        %s332 = scalar_lea.vmem %s2, %s331
      $region48: #{downsample_d.2} parent=43 // pred_fallthru
        _
      // Predicated region
      $region49: #{downsample_d.2} parent=43 // pred_check
        %p333 = pneg %p128
      $region50: #{downsample_d.2} parent=43 // pred_check_branch
        %335 = sbr.rel (%p333) target = $region52
      $region51: #{downsample_d.2} parent=43 // pred_region
        %p336 = scmp.lt.s32.totalorder %s21, 1
        %s337 = scalar_select %p336, %s21, 1
        %s338 = smul.addr %s337, 8
        %s339 = scalar_lea.vmem %s3, %s338
      $region52: #{downsample_d.2} parent=43 // pred_fallthru
        _
    $region44: #{downsample_d.2} parent=5 // pred_fallthru
      _
  $region6: #{downsample_d.2} parent=0 // loop_footer
    %s14 = sadd.s32 1, %s10
  $region7: #{downsample_d.2} parent=0 // loop_footer_branch
    %9 = sbr.rel target = $region3
  $region8: #{downsample_d.2} parent=0 // loop_exit
    _

// kernel: downsample_d.3
$region0: #{downsample_d.3}
  #allocation0 [shape = 'u32[]', space=smem, size = 0x4, offset = 0x4, fixed_abs, tag = 'smem constant byte address 0x4 - core index']
  #allocation1 [shape = 'u32[144,128]{1,0:T(1,128)}', space=vmem, size = 0x12000, scoped, tag = 'internal scratch']
  %s0 = inlined_call_operand.vmem [shape: f32[8,1], index: 0, kind: input, shape index: {}]
  %s1 = inlined_call_operand.vmem [shape: f32[8,1], index: 1, kind: input, shape index: {}]
  %s2 = inlined_call_operand.vmem [shape: f32[2,8,64], index: 2, kind: input, shape index: {}, may-alias: {2,3}]
  %s3 = inlined_call_operand.vmem [shape: f32[2,8,64], index: 3, kind: output, shape index: {}, may-alias: {2,3}]
  %s4 = sld [smem:[#allocation0]]
  $region45: #{downsample_d.3} parent=0
    _
  %s6 = ssub.s32 1, %s4
  %s7 = scalar_select 0, %s6, %s4
  loop: start=0, step=1, limit=4
  $region2: #{downsample_d.3} parent=0 // loop_pre_header
    _
  $region3: #{downsample_d.3} parent=0 // loop_header
    %s9 = sphi 0, %s13
    %p10 = scmp.ge.s32.totalorder %s9, 4
    %s17 = sphi 0, %s17
    %s19 = sphi 0, %s17
    %s20 = sphi 0, %s19
    %s34 = sphi 0, %s20
    %s38 = sphi 0, %s38
    %s40 = sphi 0, %s38
    %s41 = sphi 0, %s40
    %s55 = sphi 0, %s41
    %s61 = sphi 0, %s63
    %s64 = sphi 0, %s61
    %s65 = sphi 0, %s64
    %s81 = sphi 0, %s65
    %s87 = sphi 0, %s89
    %s90 = sphi 0, %s87
    %s91 = sphi 0, %s90
    %s107 = sphi 0, %s91
  $region4: #{downsample_d.3} parent=0 // loop_header_branch
    %12 = sbr.rel (%p10) target = $region8
  $region5: #{downsample_d.3} parent=0 // loop_body
    %s14 = ssub.s32 %s9, 1
    %s15 = ssub.s32 %s9, 2
    %s16 = sadd.s32 %s9, 1
    %s18 = sadd.s32 %s17, 1
    %p21 = scmp.eq.s32.totalorder %s9, 1
    %p22 = scmp.ne.s32.totalorder %s17, %s19
    %p23 = scmp.eq.s32.totalorder %s9, 0
    %p24 = por %p22, %p23
    %p25 = scmp.ne.s32.totalorder %s17, %s19
    %p26 = scmp.eq.s32.totalorder %s14, 1
    %p27 = por %p25, %p26
    %p28 = scmp.ne.s32.totalorder %s19, %s20
    %p29 = scmp.eq.s32.totalorder %s14, 0
    %p30 = por %p28, %p29
    %p31 = scmp.ne.s32.totalorder %s19, %s20
    %p32 = scmp.eq.s32.totalorder %s15, 1
    %p33 = por %p31, %p32
    %p35 = scmp.ne.s32.totalorder %s20, %s34
    %p36 = scmp.eq.s32.totalorder %s15, 0
    %p37 = por %p35, %p36
    %s39 = sadd.s32 %s38, 1
    %p42 = scmp.eq.s32.totalorder %s9, 1
    %p43 = scmp.ne.s32.totalorder %s38, %s40
    %p44 = scmp.eq.s32.totalorder %s9, 0
    %p45 = por %p43, %p44
    %p46 = scmp.ne.s32.totalorder %s38, %s40
    %p47 = scmp.eq.s32.totalorder %s14, 1
    %p48 = por %p46, %p47
    %p49 = scmp.ne.s32.totalorder %s40, %s41
    %p50 = scmp.eq.s32.totalorder %s14, 0
    %p51 = por %p49, %p50
    %p52 = scmp.ne.s32.totalorder %s40, %s41
    %p53 = scmp.eq.s32.totalorder %s15, 1
    %p54 = por %p52, %p53
    %p56 = scmp.ne.s32.totalorder %s41, %s55
    %p57 = scmp.eq.s32.totalorder %s15, 0
    %p58 = por %p56, %p57
    %s59 = ssub.s32 %s9, %s16
    %p60 = scmp.eq.s32.totalorder %s59, 0
    %s62 = sadd.s32 %s61, 1
    %s63 = scalar_select %p60, %s61, %s62
    %p66 = pneg %p60
    %p67 = scmp.eq.s32.totalorder %s9, 1
    %p68 = por %p66, %p67
    %p69 = scmp.ne.s32.totalorder %s61, %s64
    %p70 = scmp.eq.s32.totalorder %s9, 0
    %p71 = por %p69, %p70
    %p72 = scmp.ne.s32.totalorder %s61, %s64
    %p73 = scmp.eq.s32.totalorder %s14, 1
    %p74 = por %p72, %p73
    %p75 = scmp.ne.s32.totalorder %s64, %s65
    %p76 = scmp.eq.s32.totalorder %s14, 0
    %p77 = por %p75, %p76
    %p78 = scmp.ne.s32.totalorder %s64, %s65
    %p79 = scmp.eq.s32.totalorder %s15, 1
    %p80 = por %p78, %p79
    %p82 = scmp.ne.s32.totalorder %s65, %s81
    %p83 = scmp.eq.s32.totalorder %s15, 0
    %p84 = por %p82, %p83
    %s85 = ssub.s32 %s9, %s16
    %p86 = scmp.eq.s32.totalorder %s85, 0
    %s88 = sadd.s32 %s87, 1
    %s89 = scalar_select %p86, %s87, %s88
    %p92 = pneg %p86
    %p93 = scmp.eq.s32.totalorder %s9, 1
    %p94 = por %p92, %p93
    %p95 = scmp.ne.s32.totalorder %s87, %s90
    %p96 = scmp.eq.s32.totalorder %s9, 0
    %p97 = por %p95, %p96
    %p98 = scmp.ne.s32.totalorder %s87, %s90
    %p99 = scmp.eq.s32.totalorder %s14, 1
    %p100 = por %p98, %p99
    %p101 = scmp.ne.s32.totalorder %s90, %s91
    %p102 = scmp.eq.s32.totalorder %s14, 0
    %p103 = por %p101, %p102
    %p104 = scmp.ne.s32.totalorder %s90, %s91
    %p105 = scmp.eq.s32.totalorder %s15, 1
    %p106 = por %p104, %p105
    %p108 = scmp.ne.s32.totalorder %s91, %s107
    %p109 = scmp.eq.s32.totalorder %s15, 0
    %p110 = por %p108, %p109
    %p111 = scmp.le.s32.totalorder 1, %s9
    %p112 = scmp.lt.s32.totalorder %s9, 3
    %p113 = pnand %p111, %p112
    %p114 = pneg %p113
    // Predicated region
    $region9: #{downsample_d.3} parent=5 // pred_check
      _
    $region10: #{downsample_d.3} parent=5 // pred_check_branch
      %116 = sbr.rel (%p113) target = $region12
    $region11: #{downsample_d.3} parent=5 // pred_region
      %s117 = ssub.s32 %s9, 1
      // Predicated region
      $region13: #{downsample_d.3} parent=11 // pred_check
        %p118 = pneg %p30
      $region14: #{downsample_d.3} parent=11 // pred_check_branch
        %120 = sbr.rel (%p118) target = $region16
      $region15: #{downsample_d.3} parent=11 // pred_region
        _
      $region16: #{downsample_d.3} parent=11 // pred_fallthru
        _
      // Predicated region
      $region17: #{downsample_d.3} parent=11 // pred_check
        %p121 = pneg %p51
      $region18: #{downsample_d.3} parent=11 // pred_check_branch
        %123 = sbr.rel (%p121) target = $region20
      $region19: #{downsample_d.3} parent=11 // pred_region
        _
      $region20: #{downsample_d.3} parent=11 // pred_fallthru
        _
    $region12: #{downsample_d.3} parent=5 // pred_fallthru
      _
    %p124 = scmp.lt.s32.totalorder %s9, 2
    // Predicated region
    $region21: #{downsample_d.3} parent=5 // pred_check
      %p125 = pneg %p124
    $region22: #{downsample_d.3} parent=5 // pred_check_branch
      %127 = sbr.rel (%p125) target = $region24
    $region23: #{downsample_d.3} parent=5 // pred_region
      // Predicated region
      $region25: #{downsample_d.3} parent=23 // pred_check
        %p128 = pneg %p71
      $region26: #{downsample_d.3} parent=23 // pred_check_branch
        %130 = sbr.rel (%p128) target = $region28
      $region27: #{downsample_d.3} parent=23 // pred_region
        %p131 = scmp.lt.s32.totalorder %s9, 1
        %s132 = scalar_select %p131, %s9, 1
        %s133 = smul.addr %s132, 8
        %s134 = scalar_lea.vmem %s2, %s133
      $region28: #{downsample_d.3} parent=23 // pred_fallthru
        _
    $region24: #{downsample_d.3} parent=5 // pred_fallthru
      _
    %p135 = scmp.le.s32.totalorder 1, %s9
    %p136 = scmp.lt.s32.totalorder %s9, 3
    %p137 = pnand %p135, %p136
    %p138 = pneg %p137
    // Predicated region
    $region29: #{downsample_d.3} parent=5 // pred_check
      _
    $region30: #{downsample_d.3} parent=5 // pred_check_branch
      %140 = sbr.rel (%p137) target = $region32
    $region31: #{downsample_d.3} parent=5 // pred_region
      %s141 = ssub.s32 %s9, 1
      %p142 = pneg %p30
      %p143 = pneg %p27
      %p144 = pneg %p51
      %p145 = pneg %p48
      %p146 = scmp.lt.s32.totalorder %s14, 1
      %s147 = scalar_select %p146, %s14, 1
      %s148 = smul.addr %s147, 8
      %s149 = scalar_lea.vmem %s2, %s148
      %p150 = pneg %p77
      %p151 = pneg %p74
      %p152 = pneg %p103
      %p153 = pneg %p100
      %p154 = scmp.lt.s32.totalorder %s14, 1
      %s155 = scalar_select %p154, %s14, 1
      %s156 = smul.addr %s155, 8
      %s157 = scalar_lea.vmem %s3, %s156
      %p158 = scmp.lt.s32.totalorder %s14, 1
      %s159 = scalar_select %p158, %s14, 1
      %s160 = smul.addr %s159, 8
      %s161 = scalar_lea.vmem %s2, %s160
      %p162 = scmp.lt.s32.totalorder %s14, 1
      %s163 = scalar_select %p162, %s14, 1
      %s164 = smul.addr %s163, 8
      %s165 = scalar_lea.vmem %s3, %s164
      %v166 = vld [vmem:[%s161] sm:$0xff]
      %v167 = vld [vmem:[%s0] sm:$0xff]
      %169 = vset.pattern.permute.xlu0 0
      %170 = vperm.xlu0 %169, %v167
      %v171 = vpop.permute.xlu0 %170
      %v173 = vmul.f32 %v166, %v171
      %v174 = vld [vmem:[%s1] sm:$0xff]
      %176 = vset.pattern.permute.xlu0 0
      %177 = vperm.xlu0 %176, %v174
      %v178 = vpop.permute.xlu0 %177
      %v180 = vadd.f32 %v173, %v178
      %vm181 = vcmask 523264
      %182 = vst.msk [vmem:[%s165] sm:$0xff] %vm181, %v180
      %p183 = scmp.lt.s32.totalorder %s14, 1
      %s184 = scalar_select %p183, %s14, 1
      %s185 = smul.addr %s184, 8
      %s186 = scalar_lea.vmem %s3, %s185
      // Predicated region
      $region33: #{downsample_d.3} parent=31 // pred_check
        %p187 = pneg %p100
      $region34: #{downsample_d.3} parent=31 // pred_check_branch
        %189 = sbr.rel (%p187) target = $region36
      $region35: #{downsample_d.3} parent=31 // pred_region
        _
      $region36: #{downsample_d.3} parent=31 // pred_fallthru
        _
    $region32: #{downsample_d.3} parent=5 // pred_fallthru
      _
    %p190 = scmp.le.s32.totalorder 2, %s9
    // Predicated region
    $region37: #{downsample_d.3} parent=5 // pred_check
      %p191 = pneg %p190
    $region38: #{downsample_d.3} parent=5 // pred_check_branch
      %193 = sbr.rel (%p191) target = $region40
    $region39: #{downsample_d.3} parent=5 // pred_region
      %s194 = ssub.s32 %s9, 2
      // Predicated region
      $region41: #{downsample_d.3} parent=39 // pred_check
        %p195 = pneg %p106
      $region42: #{downsample_d.3} parent=39 // pred_check_branch
        %197 = sbr.rel (%p195) target = $region44
      $region43: #{downsample_d.3} parent=39 // pred_region
        %p198 = scmp.lt.s32.totalorder %s15, 1
        %s199 = scalar_select %p198, %s15, 1
        %s200 = smul.addr %s199, 8
        %s201 = scalar_lea.vmem %s3, %s200
      $region44: #{downsample_d.3} parent=39 // pred_fallthru
        _
    $region40: #{downsample_d.3} parent=5 // pred_fallthru
      _
  $region6: #{downsample_d.3} parent=0 // loop_footer
    %s13 = sadd.s32 1, %s9
  $region7: #{downsample_d.3} parent=0 // loop_footer_branch
    %8 = sbr.rel target = $region3
  $region8: #{downsample_d.3} parent=0 // loop_exit
    _

</llo_original>
